<compile_context>
chip_gen: v7x
topology: tpu7x:2x2x1
jax: 0.10.0
libtpu: 0.0.40
codegen_flags: <defaults>
</compile_context>

<pallas_src>
import numpy as np
import jax
import jax.numpy as jnp
from jax.experimental import pallas as pl
from jax.experimental.pallas import tpu as pltpu

# ---- PARAMETERS (the module pulls these from a global dict) -----------------
PARAMETERS = {
    "INPUT_DIM": 8,
    "NUM_QUBITS": 4,
    "QUANTUM_LAYERS": 2,
}

_LANE = 128  # lane-dense width for the Z-sign matrix / output


# ------------------------------ Pallas kernel --------------------------------
def quantum_neuron_kernel(gates_ref, zsign_ref, psi_ref, out_ref):
    """Apply G fused per-layer unitaries to a batch of states, then expvals.

    gates_ref: (G, 2D, 2D) f32 -- layer g's unitary (per-wire Rots kron-fused,
                                  CNOT ring folded in as a trace-time row
                                  permutation), stored TRANSPOSED in 2x2
                                  real-block form so psi_row' = psi_row @ block.
    zsign_ref: (2D, 128)   f32 -- duplicated PauliZ sign matrix, pre-scaled by
                                  clip(luminosity, 0, 1), zero-padded lane-dense.
    psi_ref  : (Bblk, 2D)  f32 -- row-vector states [Re | Im] after RY embedding.
    out_ref  : (Bblk, 128) f32 -- lanes [0, num_qubits) hold expvals * lum.
    """
    G = gates_ref.shape[0]
    psi = psi_ref[...]                                    # (Bblk, 2D)
    for g in range(G):                                    # static unroll, G = num_layers
        psi = jnp.dot(psi, gates_ref[g], preferred_element_type=jnp.float32)
    # <Z_q> * lum = sum_s zsign_scaled(s, q) * (re_s^2 + im_s^2)
    out_ref[...] = jnp.dot(psi * psi, zsign_ref[...],
                           preferred_element_type=jnp.float32)


# ------------------------- constant helpers (numpy) ---------------------------
def _cnot_ring_inv_perm_np(layer, n):
    """Inverse permutation of one layer's CNOT ring: (P @ U) == U[inv, :]."""
    D = 2 ** n
    r = (layer % (n - 1)) + 1
    s = np.arange(D)
    perm = s.copy()                       # total map: s -> perm[s]
    for i in range(n):
        c, t = i, (i + r) % n             # PennyLane: wire 0 = MSB
        cbit = (s >> (n - 1 - c)) & 1
        mapped = np.where(cbit == 1, s ^ (1 << (n - 1 - t)), s)
        perm = mapped[perm]               # compose gate i after previous gates
    return np.argsort(perm)


def _zsign_padded_np(n):
    """Duplicated PauliZ sign matrix, zero-padded lane-dense: (2D, 128)."""
    D = 2 ** n
    s = np.arange(D)[:, None]
    q = np.arange(n)[None, :]
    Z = (1.0 - 2.0 * ((s >> (n - 1 - q)) & 1)).astype(np.float32)   # (D, n)
    Zp = np.zeros((2 * D, _LANE), np.float32)
    Zp[:D, :n] = Z
    Zp[D:, :n] = Z
    return Zp


# ------------------------- trace-time circuit fusion (jnp) ---------------------
def _build_layer_gates(qlayer_weights, num_qubits, num_layers):
    """Fused per-layer unitaries, packed as transposed 2x2 real blocks.

    Returns (G, 2D, 2D) f32 with G = max(num_layers, 1).
    """
    n, L, D = num_qubits, num_layers, 2 ** num_qubits
    if L == 0:
        U = jnp.eye(D, dtype=jnp.complex64)[None]         # RY-only circuit
    else:
        w = jnp.asarray(qlayer_weights, jnp.float32).reshape(L, n, 3)
        phi, th, om = w[..., 0], w[..., 1], w[..., 2]
        c, s = jnp.cos(th * 0.5), jnp.sin(th * 0.5)
        ea = jnp.exp(0.5j * (phi + om))                    # e^{+i(phi+omega)/2}
        eb = jnp.exp(0.5j * (phi - om))                    # e^{+i(phi-omega)/2}
        # PennyLane Rot(phi, theta, omega) = RZ(omega) RY(theta) RZ(phi):
        #   [[c e^{-i(phi+om)/2}, -s e^{+i(phi-om)/2}],
        #    [s e^{-i(phi-om)/2},  c e^{+i(phi+om)/2}]]
        row0 = jnp.stack([c * jnp.conj(ea), -s * eb], axis=-1)
        row1 = jnp.stack([s * jnp.conj(eb), c * ea], axis=-1)
        rot = jnp.stack([row0, row1], axis=-2)             # (L, n, 2, 2) c64

        # Batched kron over wires (wire 0 = MSB outermost).
        U = rot[:, 0]
        for q in range(1, n):
            d = U.shape[1]
            U = jnp.einsum('lij,lkm->likjm', U, rot[:, q]).reshape(L, 2 * d, 2 * d)

        # Fold the constant CNOT ring: P_l @ U_l is a row gather (exact).
        if n > 1:
            inv = jnp.asarray(np.stack([_cnot_ring_inv_perm_np(l, n)
                                        for l in range(L)]), jnp.int32)  # (L, D)
            U = U[jnp.arange(L)[:, None], inv, :]          # (L, D, D)

    # Transposed 2x2 real-block packing: one real dot per complex gate.
    Ur = jnp.real(U).astype(jnp.float32)
    Ui = jnp.imag(U).astype(jnp.float32)
    UrT = jnp.swapaxes(Ur, 1, 2)
    UiT = jnp.swapaxes(Ui, 1, 2)
    top = jnp.concatenate([UrT, UiT], axis=2)              # (G, D, 2D)
    bot = jnp.concatenate([-UiT, UrT], axis=2)              # (G, D, 2D)
    return jnp.concatenate([top, bot], axis=1)              # (G, 2D, 2D)


def _embedded_state_rows(theta, num_qubits):
    """RY-embedded |0..0> states as real row vectors.

    theta: (B, n) angles. Returns (B, 2D) f32 [Re | Im=0] rows.
    """
    amps = jnp.stack([jnp.cos(theta * 0.5), jnp.sin(theta * 0.5)], axis=-1)  # (B,n,2)
    v = amps[:, 0]
    for q in range(1, num_qubits):                      # wire 0 stays MSB
        B, d = v.shape
        v = (v[:, :, None] * amps[:, q][:, None, :]).reshape(B, 2 * d)
    return jnp.concatenate([v, jnp.zeros_like(v)], axis=1)


# ------------------------------ batched forward --------------------------------
def quantum_neuron_forward_batch(x_flat, qlayer_weights, luminosity,
                                 input_dim=PARAMETERS["INPUT_DIM"],
                                 num_qubits=PARAMETERS["NUM_QUBITS"],
                                 num_layers=PARAMETERS["QUANTUM_LAYERS"],
                                 block_b=8):
    """Batched circuit evaluation. x_flat: (B, input_dim) pre-flattened inputs.

    block_b must be a multiple of 8; raise to 128/256 for large batches to fill
    MXU sublanes (the batch is padded to a multiple of block_b).
    """
    n = num_qubits
    D = 2 ** n
    twoD = 2 * D
    B = x_flat.shape[0]

    # RY angles (inputs[q % input_dim]) -> embedded row states.
    theta = jnp.asarray(x_flat, jnp.float32)[:, np.arange(n) % input_dim]   # (B, n)
    psi0 = _embedded_state_rows(theta, n)                                    # (B, 2D)

    B_pad = -(-B // block_b) * block_b
    if B_pad != B:
        psi0 = jnp.concatenate(
            [psi0, jnp.zeros((B_pad - B, twoD), jnp.float32)], axis=0)

    gates = _build_layer_gates(qlayer_weights, n, num_layers)                # (G, 2D, 2D)
    lum = jnp.clip(jnp.reshape(jnp.asarray(luminosity, jnp.float32), (-1,))[0],
                   0.0, 1.0)
    zsign = jnp.asarray(_zsign_padded_np(n)) * lum                           # (2D, 128)

    G = gates.shape[0]
    grid = (B_pad // block_b,)
    out = pl.pallas_call(
        quantum_neuron_kernel,
        out_shape=jax.ShapeDtypeStruct((B_pad, _LANE), jnp.float32),
        grid=grid,
        in_specs=[
            pl.BlockSpec((G, twoD, twoD), lambda i: (0, 0, 0)),   # shared gate slab
            pl.BlockSpec((twoD, _LANE), lambda i: (0, 0)),        # shared scaled zsign
            pl.BlockSpec((block_b, twoD), lambda i: (i, 0)),      # per-block states
        ],
        out_specs=pl.BlockSpec((block_b, _LANE), lambda i: (i, 0)),
        compiler_params=pltpu.CompilerParams(
            dimension_semantics=("parallel",)),                   # v7x: 2 TCs
    )(gates, zsign, psi0)

    return out[:B, :n]                                            # (B, num_qubits)


# ------------------------------ module wrapper ---------------------------------
def quantum_neuron_forward(x, qlayer_weights, luminosity,
                           input_dim=PARAMETERS["INPUT_DIM"],
                           num_qubits=PARAMETERS["NUM_QUBITS"],
                           num_layers=PARAMETERS["QUANTUM_LAYERS"]):
    """Mirrors QuantumNeuron.forward: flatten/pad input, run circuit, scale."""
    xt = jnp.ravel(jnp.asarray(x, jnp.float32))
    cur = xt.shape[0]
    if cur > input_dim:
        xt = xt[:input_dim]
    elif cur < input_dim:
        xt = jnp.concatenate([xt, jnp.zeros(input_dim - cur, jnp.float32)])
    out = quantum_neuron_forward_batch(xt[None, :], qlayer_weights, luminosity,
                                       input_dim, num_qubits, num_layers,
                                       block_b=8)
    return out[0]                                                 # (num_qubits,)


# ------------------------------ pure-JAX reference -----------------------------
def _ry_mat(theta):
    c = jnp.cos(theta / 2.0)
    s = jnp.sin(theta / 2.0)
    return jnp.stack([jnp.stack([c, -s]), jnp.stack([s, c])]).astype(jnp.complex64)


def _rz_mat(phi):
    phi = phi.astype(jnp.complex64)
    em = jnp.exp(-0.5j * phi)
    ep = jnp.exp(0.5j * phi)
    zero = jnp.zeros((), jnp.complex64)
    return jnp.stack([jnp.stack([em, zero]), jnp.stack([zero, ep])])


def _rot_mat(phi, theta, omega):
    # PennyLane Rot(phi, theta, omega) = RZ(omega) RY(theta) RZ(phi)
    return _rz_mat(omega) @ _ry_mat(theta) @ _rz_mat(phi)


def _cnot_full_np(control, target, n):
    D = 2 ** n
    M = np.zeros((D, D), dtype=np.complex64)
    for s in range(D):
        cbit = (s >> (n - 1 - control)) & 1
        ns = s ^ (1 << (n - 1 - target)) if cbit else s
        M[ns, s] = 1.0
    return M


def _embed_1q(u2, wire, n):
    left = jnp.eye(2 ** wire, dtype=jnp.complex64)
    right = jnp.eye(2 ** (n - 1 - wire), dtype=jnp.complex64)
    return jnp.kron(jnp.kron(left, u2), right)


def _reference_forward(x, qlayer_weights, luminosity,
                       input_dim, num_qubits, num_layers):
    """Un-fused gate-by-gate simulation (validates the fusion/packing/fold)."""
    n = num_qubits
    xt = jnp.ravel(jnp.asarray(x, jnp.float32))
    cur = xt.shape[0]
    if cur > input_dim:
        xt = xt[:input_dim]
    elif cur < input_dim:
        xt = jnp.concatenate([xt, jnp.zeros(input_dim - cur, jnp.float32)])

    state = jnp.zeros((2 ** n,), jnp.complex64).at[0].set(1.0)
    gates = []
    for i in range(n):
        gates.append(_embed_1q(_ry_mat(xt[i % input_dim]), i, n))
    for l in range(num_layers):
        for i in range(n):
            gates.append(_embed_1q(_rot_mat(qlayer_weights[l, i, 0],
                                            qlayer_weights[l, i, 1],
                                            qlayer_weights[l, i, 2]), i, n))
        if n > 1:
            r = (l % (n - 1)) + 1
            for i in range(n):
                gates.append(jnp.asarray(_cnot_full_np(i, (i + r) % n, n)))
    for g in gates:
        state = g @ state
    probs = jnp.abs(state) ** 2
    zsign = jnp.asarray(_zsign_padded_np(n)[: 2 ** n, :n].T)     # (n, D)
    expv = zsign @ probs
    lum = jnp.clip(jnp.reshape(jnp.asarray(luminosity, jnp.float32), (-1,))[0],
                   0.0, 1.0)
    return expv * lum


# ------------------------------------ main --------------------------------------
if __name__ == "__main__":
    key = jax.random.PRNGKey(0)
    k_x, k_w, k_l, k_b = jax.random.split(key, 4)

    input_dim = PARAMETERS["INPUT_DIM"]
    num_qubits = PARAMETERS["NUM_QUBITS"]
    num_layers = PARAMETERS["QUANTUM_LAYERS"]

    # Deterministic synthetic parameters (shapes from __init__):
    #   qlayer_weights ~ randn(num_layers, num_qubits, 3)
    #   luminosity     ~ rand(1) * 0.3 + 0.1
    qlayer_weights = jax.random.normal(k_w, (num_layers, num_qubits, 3), jnp.float32)
    luminosity = jax.random.uniform(k_l, (1,), jnp.float32) * 0.3 + 0.1

    # ---- single sample (module forward semantics) ----
    x = jax.random.normal(k_x, (2, 4), jnp.float32)
    out = jax.block_until_ready(quantum_neuron_forward(
        x, qlayer_weights, luminosity, input_dim, num_qubits, num_layers))
    ref = jax.block_until_ready(_reference_forward(
        x, qlayer_weights, luminosity, input_dim, num_qubits, num_layers))
    if not np.allclose(np.asarray(out), np.asarray(ref), rtol=1e-4, atol=1e-5):
        raise AssertionError(f"Pallas kernel mismatch (single sample): {out} vs {ref}")

    # ---- batched path (grid over batch blocks, parallel for v7x megacore) ----
    B = 20
    xb = jax.random.normal(k_b, (B, input_dim), jnp.float32)
    outb = jax.block_until_ready(quantum_neuron_forward_batch(
        xb, qlayer_weights, luminosity, input_dim, num_qubits, num_layers,
        block_b=8))
    refb = np.stack([np.asarray(jax.block_until_ready(_reference_forward(
        xb[b], qlayer_weights, luminosity, input_dim, num_qubits, num_layers)))
        for b in range(B)])
    if not np.allclose(np.asarray(outb), refb, rtol=1e-4, atol=1e-5):
        raise AssertionError("Pallas kernel mismatch (batched)")

    print("KERNEL_OK")
</pallas_src>

<mosaic_0001>
module attributes {stable_mosaic.version = 11 : i64} {
  func.func @quantum_neuron_kernel(%arg0: i32, %arg1: memref<2x32x32xf32, #tpu.memory_space<vmem>>, %arg2: memref<32x128xf32, #tpu.memory_space<vmem>>, %arg3: memref<8x32xf32, #tpu.memory_space<vmem>>, %arg4: memref<8x128xf32, #tpu.memory_space<vmem>>) attributes {dimension_semantics = [#tpu.dimension_semantics<parallel>], iteration_bounds = array<i64: 1>, scalar_prefetch = 0 : i64, scratch_operands = 0 : i64, tpu.core_type = #tpu.core_type<tc>, window_params = [{pipeline_mode = #tpu.pipeline_mode<synchronous>, transform_indices = @transform_0, window_bounds = array<i64: 2, 32, 32>}, {pipeline_mode = #tpu.pipeline_mode<synchronous>, transform_indices = @transform_1, window_bounds = array<i64: 32, 128>}, {transform_indices = @transform_2, window_bounds = array<i64: 8, 32>}, {transform_indices = @transform_3, window_bounds = array<i64: 8, 128>}]} {
    %c0 = arith.constant 0 : index
    %c0_0 = arith.constant 0 : index
    %0 = vector.load %arg3[%c0, %c0_0] : memref<8x32xf32, #tpu.memory_space<vmem>>, vector<8x32xf32>
    %c0_1 = arith.constant 0 : index
    %c0_2 = arith.constant 0 : index
    %c0_3 = arith.constant 0 : index
    %1 = vector.load %arg1[%c0_1, %c0_2, %c0_3] : memref<2x32x32xf32, #tpu.memory_space<vmem>>, vector<1x32x32xf32>
    %2 = vector.shape_cast %1 : vector<1x32x32xf32> to vector<32x32xf32>
    %cst = arith.constant dense<0.000000e+00> : vector<8x32xf32>
    %3 = tpu.matmul %0, %2, %cst {dimension_numbers = #tpu.dot_dimension_numbers<[1], [0], [0], [1], [0, 0, 1, 1], [], []>} : vector<8x32xf32>, vector<32x32xf32>, vector<8x32xf32> -> vector<8x32xf32>
    %c1 = arith.constant 1 : index
    %c0_4 = arith.constant 0 : index
    %c0_5 = arith.constant 0 : index
    %4 = vector.load %arg1[%c1, %c0_4, %c0_5] : memref<2x32x32xf32, #tpu.memory_space<vmem>>, vector<1x32x32xf32>
    %5 = vector.shape_cast %4 : vector<1x32x32xf32> to vector<32x32xf32>
    %cst_6 = arith.constant dense<0.000000e+00> : vector<8x32xf32>
    %6 = tpu.matmul %3, %5, %cst_6 {dimension_numbers = #tpu.dot_dimension_numbers<[1], [0], [0], [1], [0, 0, 1, 1], [], []>} : vector<8x32xf32>, vector<32x32xf32>, vector<8x32xf32> -> vector<8x32xf32>
    %7 = arith.mulf %6, %6 : vector<8x32xf32>
    %c0_7 = arith.constant 0 : index
    %c0_8 = arith.constant 0 : index
    %8 = vector.load %arg2[%c0_7, %c0_8] : memref<32x128xf32, #tpu.memory_space<vmem>>, vector<32x128xf32>
    %cst_9 = arith.constant dense<0.000000e+00> : vector<8x128xf32>
    %9 = tpu.matmul %7, %8, %cst_9 {dimension_numbers = #tpu.dot_dimension_numbers<[1], [0], [0], [1], [0, 0, 1, 1], [], []>} : vector<8x32xf32>, vector<32x128xf32>, vector<8x128xf32> -> vector<8x128xf32>
    %c0_10 = arith.constant 0 : index
    %c0_11 = arith.constant 0 : index
    %10 = vector.load %arg4[%c0_10, %c0_11] : memref<8x128xf32, #tpu.memory_space<vmem>>, vector<8x128xf32>
    tpu.vector_store %arg4[%c0_10, %c0_11], %9 {strides = array<i32>} : memref<8x128xf32, #tpu.memory_space<vmem>>, vector<8x128xf32>,
    return
  }
  func.func @transform_0(%arg0: i32) -> (i32, i32, i32) {
    %c0_i32 = arith.constant 0 : i32
    %c0_i32_0 = arith.constant 0 : i32
    %c0_i32_1 = arith.constant 0 : i32
    %c0_i32_2 = arith.constant 0 : i32
    return %c0_i32, %c0_i32_0, %c0_i32_1 : i32, i32, i32
  }
  func.func @transform_1(%arg0: i32) -> (i32, i32) {
    %c0_i32 = arith.constant 0 : i32
    %c0_i32_0 = arith.constant 0 : i32
    %c0_i32_1 = arith.constant 0 : i32
    return %c0_i32, %c0_i32_0 : i32, i32
  }
  func.func @transform_2(%arg0: i32) -> (i32, i32) {
    %c0_i32 = arith.constant 0 : i32
    %c0_i32_0 = arith.constant 0 : i32
    return %arg0, %c0_i32 : i32, i32
  }
  func.func @transform_3(%arg0: i32) -> (i32, i32) {
    %c0_i32 = arith.constant 0 : i32
    %c0_i32_0 = arith.constant 0 : i32
    return %arg0, %c0_i32 : i32, i32
  }
}

</mosaic_0001>

<llo_original>
// kernel: tpu_custom_call.1
$region0: #{tpu_custom_call.1}
  #allocation0 [shape = 'u32[]', space=smem, size = 0x4, offset = 0x4, fixed_abs, tag = 'smem constant byte address 0x4 - core index']
  #allocation1 [shape = 'u32[144,128]{1,0:T(1,128)}', space=vmem, size = 0x12000, scoped, tag = 'internal scratch']
  %s0 = inlined_call_operand.hbm [shape: f32[2,32,32], index: 0, kind: input, shape index: {}]
  %s1 = inlined_call_operand.hbm [shape: f32[32,128], index: 1, kind: input, shape index: {}]
  %s2 = inlined_call_operand.hbm [shape: f32[8,32], index: 2, kind: input, shape index: {}]
  %s3 = inlined_call_operand.hbm [shape: f32[8,128], index: 3, kind: output, shape index: {}]
  %s4 = sld [smem:[#allocation0]]
  $region34: #{tpu_custom_call.1} parent=0
    _
  %s6 = ssub.s32 1, %s4
  %s7 = scalar_select 0, %s6, %s4
  $region1: #{tpu_custom_call.1} parent=0
    #allocation2 [shape = 'u8[32768]{0}', space=vmem, size = 0x8000, scoped, tag = 'input window, operand 0, single buffered']
    #allocation3 [shape = 's32[1]{0}', space=sflag, size = 0x4, scoped, tag = 'scoped memory for tpu_custom_call.1']
    #allocation4 [shape = 's32[1]{0}', space=sflag, size = 0x4, scoped, tag = 'scoped memory for tpu_custom_call.1']
    #allocation5 [shape = 'u8[16384]{0}', space=vmem, size = 0x4000, scoped, tag = 'input window, operand 1, single buffered']
    #allocation6 [shape = 's32[1]{0}', space=sflag, size = 0x4, scoped, tag = 'scoped memory for tpu_custom_call.1']
    #allocation7 [shape = 'u8[4096]{0}', space=vmem, size = 0x1000, scoped, tag = 'input window, operand 2, single buffered']
    #allocation8 [shape = 'u8[4096]{0}', space=vmem, size = 0x1000, scoped, tag = 'output window, operand 0, single buffered']
    %8 = vsyncpa [#allocation3], 0
    %9 = vsyncpa [#allocation6], 0
    %10 = vsyncpa [#allocation4], 0
    // Predicated region
    $region2: #{tpu_custom_call.1} parent=1 // pred_check
      _
    $region3: #{tpu_custom_call.1} parent=1 // pred_check_branch
      %12 = sbr.rel (0) target = $region5
    $region4: #{tpu_custom_call.1} parent=1 // pred_region
      %s14 = ssub.s32 1024, 1024
      %15 = vsyncadd [#allocation3], %s14
      %s16 = sshll.u32 [#allocation2], 4
      %s17 = int_to_ptr.vmem [resolvable:$true] %s16
      %22 = dma.hbm_to_vmem [thread:$0]  %s0, 1024, %s17, [#allocation3], 128, 128, 8
    $region5: #{tpu_custom_call.1} parent=1 // pred_fallthru
      _
    // Predicated region
    $region6: #{tpu_custom_call.1} parent=1 // pred_check
      _
    $region7: #{tpu_custom_call.1} parent=1 // pred_check_branch
      %24 = sbr.rel (0) target = $region9
    $region8: #{tpu_custom_call.1} parent=1 // pred_region
      %s26 = ssub.s32 512, 512
      %27 = vsyncadd [#allocation6], %s26
      %s28 = sshll.u32 [#allocation5], 4
      %s29 = int_to_ptr.vmem [resolvable:$true] %s28
      %34 = dma.hbm_to_vmem [thread:$0]  %s1, 512, %s29, [#allocation6], 128, 128, 8
    $region9: #{tpu_custom_call.1} parent=1 // pred_fallthru
      _
    // Predicated region
    $region10: #{tpu_custom_call.1} parent=1 // pred_check
      _
    $region11: #{tpu_custom_call.1} parent=1 // pred_check_branch
      %36 = sbr.rel (0) target = $region13
    $region12: #{tpu_custom_call.1} parent=1 // pred_region
      %s38 = ssub.s32 128, 128
      %39 = vsyncadd [#allocation6], %s38
      %s41 = sshll.u32 [#allocation7], 4
      %s42 = int_to_ptr.vmem [resolvable:$true] %s41
      %44 = dma.hbm_to_vmem [thread:$0]  %s2, 128, %s42, [#allocation6]
    $region13: #{tpu_custom_call.1} parent=1 // pred_fallthru
      _
    // Predicated region
    $region14: #{tpu_custom_call.1} parent=1 // pred_check
      _
    $region15: #{tpu_custom_call.1} parent=1 // pred_check_branch
      %46 = sbr.rel (0) target = $region17
    $region16: #{tpu_custom_call.1} parent=1 // pred_region
      %47 = dma.done [#allocation3], 1024
    $region17: #{tpu_custom_call.1} parent=1 // pred_fallthru
      _
    // Predicated region
    $region18: #{tpu_custom_call.1} parent=1 // pred_check
      _
    $region19: #{tpu_custom_call.1} parent=1 // pred_check_branch
      %49 = sbr.rel (0) target = $region21
    $region20: #{tpu_custom_call.1} parent=1 // pred_region
      %50 = dma.done [#allocation6], 512
    $region21: #{tpu_custom_call.1} parent=1 // pred_fallthru
      _
    // Predicated region
    $region22: #{tpu_custom_call.1} parent=1 // pred_check
      _
    $region23: #{tpu_custom_call.1} parent=1 // pred_check_branch
      %52 = sbr.rel (0) target = $region25
    $region24: #{tpu_custom_call.1} parent=1 // pred_region
      %53 = dma.done [#allocation6], 128
    $region25: #{tpu_custom_call.1} parent=1 // pred_fallthru
      _
    %v54 = vld [vmem:[#allocation7] sm:$0xff]
    %v55 = vld [vmem:[#allocation2] sm:$0xff]
    %v56 = vld [vmem:[#allocation2 + $0x8] sm:$0xff]
    %v57 = vld [vmem:[#allocation2 + $0x10] sm:$0xff]
    %v58 = vld [vmem:[#allocation2 + $0x18] sm:$0xff]
    %vm59 = vcmask 261120
    %v61 = vsel %vm59, %v54, 0
    %63 = vmatprep.subr.mxu0 0.0
    %64 = vmatpush1.msra.mxu0 %v55
    %65 = vmatprep.subr.mxu0 0.0
    %66 = vmatpush1.msra.mxu0 %v56
    %67 = vmatprep.subr.mxu0 0.0
    %68 = vmatpush1.msra.mxu0 %v57
    %69 = vmatprep.subr.mxu0 0.0
    %70 = vmatpush1.msra.mxu0 %v58
    %71 = vmatprep.subr.mxu0 0.0
    %72 = vmatpush1.msra.mxu0 0.0
    %73 = vmatprep.subr.mxu0 0.0
    %74 = vmatpush1.msra.mxu0 0.0
    %75 = vmatprep.subr.mxu0 0.0
    %76 = vmatpush1.msra.mxu0 0.0
    %77 = vmatprep.subr.mxu0 0.0
    %78 = vmatpush1.msra.mxu0 0.0
    %79 = vmatprep.subr.mxu0 0.0
    %80 = vmatpush1.msra.mxu0 0.0
    %81 = vmatprep.subr.mxu0 0.0
    %82 = vmatpush1.msra.mxu0 0.0
    %83 = vmatprep.subr.mxu0 0.0
    %84 = vmatpush1.msra.mxu0 0.0
    %85 = vmatprep.subr.mxu0 0.0
    %86 = vmatpush1.msra.mxu0 0.0
    %87 = vmatprep.subr.mxu0 0.0
    %88 = vmatpush1.msra.mxu0 0.0
    %89 = vmatprep.subr.mxu0 0.0
    %90 = vmatpush1.msra.mxu0 0.0
    %91 = vmatprep.subr.mxu0 0.0
    %92 = vmatpush1.msra.mxu0 0.0
    %93 = vmatprep.subr.mxu0 0.0
    %94 = vmatpush1.msra.mxu0 0.0
    %95 = vmatprep.subr.mxu0 0.0
    %96 = vmatpush1.msra.mxu0 0.0
    %97 = vmatprep.subr.mxu0 0.0
    %98 = vmatpush1.msra.mxu0 0.0
    %99 = vmatprep.subr.mxu0 0.0
    %100 = vmatpush1.msra.mxu0 0.0
    %101 = vmatprep.subr.mxu0 0.0
    %102 = vmatpush1.msra.mxu0 0.0
    %103 = vmatprep.subr.mxu0 0.0
    %104 = vmatpush1.msra.mxu0 0.0
    %105 = vmatprep.subr.mxu0 0.0
    %106 = vmatpush1.msra.mxu0 0.0
    %107 = vmatprep.subr.mxu0 0.0
    %108 = vmatpush1.msra.mxu0 0.0
    %109 = vmatprep.subr.mxu0 0.0
    %110 = vmatpush1.msra.mxu0 0.0
    %111 = vmatprep.subr.mxu0 0.0
    %112 = vmatpush1.msra.mxu0 0.0
    %113 = vmatprep.subr.mxu0 0.0
    %114 = vmatpush1.msra.mxu0 0.0
    %115 = vmatprep.subr.mxu0 0.0
    %116 = vmatpush1.msra.mxu0 0.0
    %117 = vmatprep.subr.mxu0 0.0
    %118 = vmatpush1.msra.mxu0 0.0
    %119 = vmatprep.subr.mxu0 0.0
    %120 = vmatpush1.msra.mxu0 0.0
    %121 = vmatprep.subr.mxu0 0.0
    %122 = vmatpush1.msra.mxu0 0.0
    %123 = vmatprep.subr.mxu0 0.0
    %124 = vmatpush1.msra.mxu0 0.0
    %125 = vmatprep.subr.mxu0 0.0
    %126 = vmatpush1.msra.mxu0 0.0
    %127 = vmatprep.mubr.f32.mxu0 0.0
    %128 = vmatmul.mubr.f32.gmra.mrb[0].mxu0 %v61
    %v129 = vpop.f32.mrb[0].mxu0
    %v130 = vadd.f32 0.0, %v129
    %v131 = vpop.f32.mrb[0].mxu0
    %132 = vdwg.mxu0
    %s133 = scalar_lea.vmem [#allocation2], 32
    %v134 = vld [vmem:[%s133] sm:$0xff]
    %v135 = vld [vmem:[%s133 + $0x8] sm:$0xff]
    %v136 = vld [vmem:[%s133 + $0x10] sm:$0xff]
    %v137 = vld [vmem:[%s133 + $0x18] sm:$0xff]
    %v139 = vsel %vm59, %v130, 0
    %141 = vmatprep.subr.mxu0 0.0
    %142 = vmatpush1.msra.mxu0 %v134
    %143 = vmatprep.subr.mxu0 0.0
    %144 = vmatpush1.msra.mxu0 %v135
    %145 = vmatprep.subr.mxu0 0.0
    %146 = vmatpush1.msra.mxu0 %v136
    %147 = vmatprep.subr.mxu0 0.0
    %148 = vmatpush1.msra.mxu0 %v137
    %149 = vmatprep.subr.mxu0 0.0
    %150 = vmatpush1.msra.mxu0 0.0
    %151 = vmatprep.subr.mxu0 0.0
    %152 = vmatpush1.msra.mxu0 0.0
    %153 = vmatprep.subr.mxu0 0.0
    %154 = vmatpush1.msra.mxu0 0.0
    %155 = vmatprep.subr.mxu0 0.0
    %156 = vmatpush1.msra.mxu0 0.0
    %157 = vmatprep.subr.mxu0 0.0
    %158 = vmatpush1.msra.mxu0 0.0
    %159 = vmatprep.subr.mxu0 0.0
    %160 = vmatpush1.msra.mxu0 0.0
    %161 = vmatprep.subr.mxu0 0.0
    %162 = vmatpush1.msra.mxu0 0.0
    %163 = vmatprep.subr.mxu0 0.0
    %164 = vmatpush1.msra.mxu0 0.0
    %165 = vmatprep.subr.mxu0 0.0
    %166 = vmatpush1.msra.mxu0 0.0
    %167 = vmatprep.subr.mxu0 0.0
    %168 = vmatpush1.msra.mxu0 0.0
    %169 = vmatprep.subr.mxu0 0.0
    %170 = vmatpush1.msra.mxu0 0.0
    %171 = vmatprep.subr.mxu0 0.0
    %172 = vmatpush1.msra.mxu0 0.0
    %173 = vmatprep.subr.mxu0 0.0
    %174 = vmatpush1.msra.mxu0 0.0
    %175 = vmatprep.subr.mxu0 0.0
    %176 = vmatpush1.msra.mxu0 0.0
    %177 = vmatprep.subr.mxu0 0.0
    %178 = vmatpush1.msra.mxu0 0.0
    %179 = vmatprep.subr.mxu0 0.0
    %180 = vmatpush1.msra.mxu0 0.0
    %181 = vmatprep.subr.mxu0 0.0
    %182 = vmatpush1.msra.mxu0 0.0
    %183 = vmatprep.subr.mxu0 0.0
    %184 = vmatpush1.msra.mxu0 0.0
    %185 = vmatprep.subr.mxu0 0.0
    %186 = vmatpush1.msra.mxu0 0.0
    %187 = vmatprep.subr.mxu0 0.0
    %188 = vmatpush1.msra.mxu0 0.0
    %189 = vmatprep.subr.mxu0 0.0
    %190 = vmatpush1.msra.mxu0 0.0
    %191 = vmatprep.subr.mxu0 0.0
    %192 = vmatpush1.msra.mxu0 0.0
    %193 = vmatprep.subr.mxu0 0.0
    %194 = vmatpush1.msra.mxu0 0.0
    %195 = vmatprep.subr.mxu0 0.0
    %196 = vmatpush1.msra.mxu0 0.0
    %197 = vmatprep.subr.mxu0 0.0
    %198 = vmatpush1.msra.mxu0 0.0
    %199 = vmatprep.subr.mxu0 0.0
    %200 = vmatpush1.msra.mxu0 0.0
    %201 = vmatprep.subr.mxu0 0.0
    %202 = vmatpush1.msra.mxu0 0.0
    %203 = vmatprep.subr.mxu0 0.0
    %204 = vmatpush1.msra.mxu0 0.0
    %205 = vmatprep.mubr.f32.mxu0 0.0
    %206 = vmatmul.mubr.f32.gmra.mrb[0].mxu0 %v139
    %v207 = vpop.f32.mrb[0].mxu0
    %v208 = vadd.f32 0.0, %v207
    %v209 = vpop.f32.mrb[0].mxu0
    %210 = vdwg.mxu0
    %v211 = vmul.f32 %v208, %v208
    %v212 = vld [vmem:[#allocation5] sm:$0xff]
    %v213 = vld [vmem:[#allocation5 + $0x8] sm:$0xff]
    %v214 = vld [vmem:[#allocation5 + $0x10] sm:$0xff]
    %v215 = vld [vmem:[#allocation5 + $0x18] sm:$0xff]
    %v217 = vsel %vm59, %v211, 0
    %219 = vmatprep.subr.mxu0 0.0
    %220 = vmatpush1.msra.mxu0 %v212
    %221 = vmatprep.subr.mxu0 0.0
    %222 = vmatpush1.msra.mxu0 %v213
    %223 = vmatprep.subr.mxu0 0.0
    %224 = vmatpush1.msra.mxu0 %v214
    %225 = vmatprep.subr.mxu0 0.0
    %226 = vmatpush1.msra.mxu0 %v215
    %227 = vmatprep.subr.mxu0 0.0
    %228 = vmatpush1.msra.mxu0 0.0
    %229 = vmatprep.subr.mxu0 0.0
    %230 = vmatpush1.msra.mxu0 0.0
    %231 = vmatprep.subr.mxu0 0.0
    %232 = vmatpush1.msra.mxu0 0.0
    %233 = vmatprep.subr.mxu0 0.0
    %234 = vmatpush1.msra.mxu0 0.0
    %235 = vmatprep.subr.mxu0 0.0
    %236 = vmatpush1.msra.mxu0 0.0
    %237 = vmatprep.subr.mxu0 0.0
    %238 = vmatpush1.msra.mxu0 0.0
    %239 = vmatprep.subr.mxu0 0.0
    %240 = vmatpush1.msra.mxu0 0.0
    %241 = vmatprep.subr.mxu0 0.0
    %242 = vmatpush1.msra.mxu0 0.0
    %243 = vmatprep.subr.mxu0 0.0
    %244 = vmatpush1.msra.mxu0 0.0
    %245 = vmatprep.subr.mxu0 0.0
    %246 = vmatpush1.msra.mxu0 0.0
    %247 = vmatprep.subr.mxu0 0.0
    %248 = vmatpush1.msra.mxu0 0.0
    %249 = vmatprep.subr.mxu0 0.0
    %250 = vmatpush1.msra.mxu0 0.0
    %251 = vmatprep.subr.mxu0 0.0
    %252 = vmatpush1.msra.mxu0 0.0
    %253 = vmatprep.subr.mxu0 0.0
    %254 = vmatpush1.msra.mxu0 0.0
    %255 = vmatprep.subr.mxu0 0.0
    %256 = vmatpush1.msra.mxu0 0.0
    %257 = vmatprep.subr.mxu0 0.0
    %258 = vmatpush1.msra.mxu0 0.0
    %259 = vmatprep.subr.mxu0 0.0
    %260 = vmatpush1.msra.mxu0 0.0
    %261 = vmatprep.subr.mxu0 0.0
    %262 = vmatpush1.msra.mxu0 0.0
    %263 = vmatprep.subr.mxu0 0.0
    %264 = vmatpush1.msra.mxu0 0.0
    %265 = vmatprep.subr.mxu0 0.0
    %266 = vmatpush1.msra.mxu0 0.0
    %267 = vmatprep.subr.mxu0 0.0
    %268 = vmatpush1.msra.mxu0 0.0
    %269 = vmatprep.subr.mxu0 0.0
    %270 = vmatpush1.msra.mxu0 0.0
    %271 = vmatprep.subr.mxu0 0.0
    %272 = vmatpush1.msra.mxu0 0.0
    %273 = vmatprep.subr.mxu0 0.0
    %274 = vmatpush1.msra.mxu0 0.0
    %275 = vmatprep.subr.mxu0 0.0
    %276 = vmatpush1.msra.mxu0 0.0
    %277 = vmatprep.subr.mxu0 0.0
    %278 = vmatpush1.msra.mxu0 0.0
    %279 = vmatprep.subr.mxu0 0.0
    %280 = vmatpush1.msra.mxu0 0.0
    %281 = vmatprep.subr.mxu0 0.0
    %282 = vmatpush1.msra.mxu0 0.0
    %283 = vmatprep.mubr.f32.mxu0 0.0
    %284 = vmatmul.mubr.f32.gmra.mrb[0].mxu0 %v217
    %v285 = vpop.f32.mrb[0].mxu0
    %v286 = vadd.f32 0.0, %v285
    %v287 = vpop.f32.mrb[0].mxu0
    %288 = vdwg.mxu0
    %289 = vst [vmem:[#allocation8] sm:$0xff] %v286
    // Predicated region
    $region26: #{tpu_custom_call.1} parent=1 // pred_check
      _
    $region27: #{tpu_custom_call.1} parent=1 // pred_check_branch
      %291 = sbr.rel (0) target = $region29
    $region28: #{tpu_custom_call.1} parent=1 // pred_region
      %s293 = ssub.s32 128, 128
      %294 = vsyncadd [#allocation4], %s293
      %s296 = sshll.u32 [#allocation8], 4
      %s297 = int_to_ptr.vmem [resolvable:$true] %s296
      %299 = dma.vmem_to_hbm [thread:$0]  %s297, 128, %s3, [#allocation4]
    $region29: #{tpu_custom_call.1} parent=1 // pred_fallthru
      _
    // Predicated region
    $region30: #{tpu_custom_call.1} parent=1 // pred_check
      _
    $region31: #{tpu_custom_call.1} parent=1 // pred_check_branch
      %301 = sbr.rel (0) target = $region33
    $region32: #{tpu_custom_call.1} parent=1 // pred_region
      %302 = dma.done [#allocation4], 128
    $region33: #{tpu_custom_call.1} parent=1 // pred_fallthru
      _
    %303 = vsyncpa [#allocation3], 1
    %304 = vsyncpa [#allocation6], 1
    %305 = vsyncpa [#allocation4], 1

</llo_original>
